<compile_context>
chip_gen: v7x
topology: tpu7x:2x2x1
jax: 0.10.0
libtpu: 0.0.40
codegen_flags: <defaults>
</compile_context>

<pallas_src>
import jax
import jax.numpy as jnp
from jax.experimental import pallas as pl
from jax.experimental.pallas import tpu as pltpu

_MIN_PIPELINE_BYTES = 1 << 20   # above this, force >= _MIN_STEPS grid steps
_MIN_STEPS = 4


def _hardswish_kernel(x_ref, o_ref):
    x = x_ref[...].astype(jnp.float32)
    o_ref[...] = (x * (jnp.clip(x + 3.0, 0.0, 6.0) / 6.0)).astype(o_ref.dtype)


def _hardswish_jnp(x):
    # Fused-by-XLA fallback (1 HBM read + 1 write) for element counts not
    # divisible by 128: cheaper than any pad/unpad or bulk+tail-concat scheme,
    # each of which adds full extra HBM passes around the custom call.
    xf = x.astype(jnp.float32)
    return (xf * (jnp.clip(xf + 3.0, 0.0, 6.0) / 6.0)).astype(x.dtype)


def _sublane_packing(dtype):
    # Rows of a non-full block must be a multiple of this:
    # 8 for f32, 16 for bf16, 32 for int8/fp8.
    itemsize = jnp.dtype(dtype).itemsize
    return max(8, 32 // itemsize)


def _choose_lane(n, max_lane=2048):
    # Largest power-of-two multiple of 128 (<= max_lane) dividing n.
    lane = max_lane
    while lane > 128 and n % lane != 0:
        lane //= 2
    return lane


def _device_block_config():
    """(target_block_bytes, vmem_limit_bytes) picked per TPU generation."""
    try:
        kind = jax.devices()[0].device_kind.lower()
    except Exception:
        kind = ""
    if "v7" in kind:
        # 64 MiB physical VMEM; ~4 buffers * 8 MiB = 32 MiB, keep headroom.
        return 8 << 20, 48 << 20
    if "v6" in kind:
        return 8 << 20, 64 << 20
    if "v5 lite" in kind or "v5lite" in kind or "v5e" in kind:
        return 3 << 20, 32 << 20
    # v5p / v4 / unknown: conservative middle ground.
    return 4 << 20, 32 << 20


def _prefer_even_steps(rows, tile_rows, packing):
    # Nudge tile_rows down (by at most 2x) so cdiv(rows, tile_rows) is even:
    # balances megacore sharding of the "parallel" grid axis on v7x.
    if (-(-rows // tile_rows)) % 2 == 0:
        return tile_rows
    t = tile_rows - packing
    floor_t = max(packing, tile_rows // 2)
    while t >= floor_t:
        if (-(-rows // t)) % 2 == 0:
            return t
        t -= packing
    return tile_rows


def hardswish(x, *, target_block_bytes=None, vmem_limit_bytes=None):
    """Elementwise HardSwish matching torch: x * clamp(x + 3, 0, 6) / 6."""
    orig_shape = x.shape
    orig_dtype = x.dtype
    itemsize = jnp.dtype(orig_dtype).itemsize
    n = x.size

    if n == 0:
        return x
    if n % 128 != 0:
        # TODO(synk): no zero-copy lane-dense 2D tiling exists for
        # non-128-divisible sizes; the fused jnp path is already at roofline.
        return _hardswish_jnp(x)

    dev_block, dev_vmem = _device_block_config()
    if target_block_bytes is None:
        target_block_bytes = dev_block
    if vmem_limit_bytes is None:
        vmem_limit_bytes = dev_vmem

    lane = _choose_lane(n)
    rows = n // lane
    x2d = jnp.reshape(x, (rows, lane))          # layout-preserving, no copy

    packing = _sublane_packing(orig_dtype)
    total_bytes = n * itemsize
    if rows <= packing:
        tile_rows = rows                         # single whole-array block
    else:
        tile_rows = max(packing, target_block_bytes // (lane * itemsize))
        tile_rows = (tile_rows // packing) * packing
        if total_bytes >= _MIN_PIPELINE_BYTES:
            # Keep >= _MIN_STEPS blocks so the parallel axis can shard across
            # TensorCores and in/out DMA overlaps with compute.
            cap = max(packing, ((rows // _MIN_STEPS) // packing) * packing)
            tile_rows = min(tile_rows, cap)
        tile_rows = min(tile_rows, rows)
        if tile_rows < rows:
            tile_rows = _prefer_even_steps(rows, tile_rows, packing)

    grid = (pl.cdiv(rows, tile_rows),)           # partial last block is masked

    cost = pl.CostEstimate(
        flops=4 * n, transcendentals=0, bytes_accessed=2 * n * itemsize)

    out = pl.pallas_call(
        _hardswish_kernel,
        out_shape=jax.ShapeDtypeStruct((rows, lane), orig_dtype),
        grid_spec=pl.GridSpec(
            grid=grid,
            in_specs=[pl.BlockSpec((tile_rows, lane), lambda i: (i, 0))],
            out_specs=pl.BlockSpec((tile_rows, lane), lambda i: (i, 0)),
        ),
        compiler_params=pltpu.CompilerParams(
            dimension_semantics=("parallel",),
            vmem_limit_bytes=vmem_limit_bytes),
        cost_estimate=cost,
    )(x2d)

    return jnp.reshape(out, orig_shape)


def _hardswish_ref(x):
    return x * (jnp.clip(x + 3.0, 0.0, 6.0) / 6.0)


if __name__ == "__main__":
    key = jax.random.PRNGKey(0)
    k1, k2, k3, k4, k5 = jax.random.split(key, 5)

    # Primary check: NCHW input matching the PyTorch module's expected layout.
    x = jax.random.normal(k1, (2, 4, 16, 16), dtype=jnp.float32) * 4.0
    y = jax.block_until_ready(hardswish(x))
    assert y.shape == x.shape and y.dtype == x.dtype
    assert jnp.allclose(y, _hardswish_ref(x), atol=1e-6, rtol=1e-6)

    # Non-128-divisible size: exercises the fused-jnp fallback (no pad/unpad).
    x2 = jax.random.normal(k2, (3, 5, 7, 11), dtype=jnp.float32) * 4.0
    y2 = jax.block_until_ready(hardswish(x2))
    assert jnp.allclose(y2, _hardswish_ref(x2), atol=1e-6, rtol=1e-6)

    # Multi-step grid with a masked partial last block (small forced tile).
    x3 = jax.random.normal(k3, (1, 3, 72, 128), dtype=jnp.float32) * 4.0
    y3 = jax.block_until_ready(hardswish(x3, target_block_bytes=32 * 1024))
    assert jnp.allclose(y3, _hardswish_ref(x3), atol=1e-6, rtol=1e-6)

    # bf16 path: checks sublane-packing-aligned tiling and f32 gate compute.
    x4 = (jax.random.normal(k4, (2, 4, 16, 16), dtype=jnp.float32) * 4.0
          ).astype(jnp.bfloat16)
    y4 = jax.block_until_ready(hardswish(x4))
    assert y4.dtype == jnp.bfloat16
    assert jnp.allclose(y4.astype(jnp.float32),
                        _hardswish_ref(x4.astype(jnp.float32)),
                        atol=5e-2, rtol=5e-2)

    # 1 MiB input: triggers the forced >=4-step (even) pipelined grid.
    x5 = jax.random.normal(k5, (4, 16, 64, 64), dtype=jnp.float32) * 4.0
    y5 = jax.block_until_ready(hardswish(x5))
    assert jnp.allclose(y5, _hardswish_ref(x5), atol=1e-6, rtol=1e-6)

    print("KERNEL_OK")
</pallas_src>

<mosaic_0001>
module attributes {stable_mosaic.version = 11 : i64} {
  func.func @_hardswish_kernel(%arg0: i32, %arg1: memref<1x2048xf32, #tpu.memory_space<vmem>>, %arg2: memref<1x2048xf32, #tpu.memory_space<vmem>>) attributes {dimension_semantics = [#tpu.dimension_semantics<parallel>], iteration_bounds = array<i64: 1>, scalar_prefetch = 0 : i64, scratch_operands = 0 : i64, tpu.core_type = #tpu.core_type<tc>, window_params = [{transform_indices = @transform_0, window_bounds = array<i64: 1, 2048>}, {transform_indices = @transform_1, window_bounds = array<i64: 1, 2048>}]} {
    %c0 = arith.constant 0 : index
    %c0_0 = arith.constant 0 : index
    %0 = vector.load %arg1[%c0, %c0_0] : memref<1x2048xf32, #tpu.memory_space<vmem>>, vector<1x2048xf32>
    %cst = arith.constant 3.000000e+00 : f32
    %1 = vector.broadcast %cst : f32 to vector<1x2048xf32>
    %2 = arith.addf %0, %1 : vector<1x2048xf32>
    %cst_1 = arith.constant 0.000000e+00 : f32
    %cst_2 = arith.constant 6.000000e+00 : f32
    %3 = vector.broadcast %cst_1 : f32 to vector<1x2048xf32>
    %4 = arith.maximumf %3, %2 : vector<1x2048xf32>
    %5 = vector.broadcast %cst_2 : f32 to vector<1x2048xf32>
    %6 = arith.minimumf %5, %4 : vector<1x2048xf32>
    %cst_3 = arith.constant 6.000000e+00 : f32
    %7 = vector.broadcast %cst_3 : f32 to vector<1x2048xf32>
    %8 = arith.divf %6, %7 : vector<1x2048xf32>
    %9 = arith.mulf %0, %8 : vector<1x2048xf32>
    %c0_4 = arith.constant 0 : index
    %c0_5 = arith.constant 0 : index
    %10 = vector.load %arg2[%c0_4, %c0_5] : memref<1x2048xf32, #tpu.memory_space<vmem>>, vector<1x2048xf32>
    tpu.vector_store %arg2[%c0_4, %c0_5], %9 {strides = array<i32>} : memref<1x2048xf32, #tpu.memory_space<vmem>>, vector<1x2048xf32>,
    return
  }
  func.func @transform_0(%arg0: i32) -> (i32, i32) {
    %c0_i32 = arith.constant 0 : i32
    %c0_i32_0 = arith.constant 0 : i32
    return %arg0, %c0_i32 : i32, i32
  }
  func.func @transform_1(%arg0: i32) -> (i32, i32) {
    %c0_i32 = arith.constant 0 : i32
    %c0_i32_0 = arith.constant 0 : i32
    return %arg0, %c0_i32 : i32, i32
  }
}

</mosaic_0001>

<llo_original>
// kernel: tpu_custom_call.1
$region0: #{tpu_custom_call.1}
  #allocation0 [shape = 'u32[]', space=smem, size = 0x4, offset = 0x4, fixed_abs, tag = 'smem constant byte address 0x4 - core index']
  #allocation1 [shape = 'u32[144,128]{1,0:T(1,128)}', space=vmem, size = 0x12000, scoped, tag = 'internal scratch']
  %s0 = inlined_call_operand.hbm [shape: f32[1,2048], index: 0, kind: input, shape index: {}]
  %s1 = inlined_call_operand.hbm [shape: f32[1,2048], index: 1, kind: output, shape index: {}]
  %s2 = sld [smem:[#allocation0]]
  $region18: #{tpu_custom_call.1} parent=0
    _
  %s4 = ssub.s32 1, %s2
  %s5 = scalar_select 0, %s4, %s2
  $region1: #{tpu_custom_call.1} parent=0
    #allocation2 [shape = 'u8[8192]{0}', space=vmem, size = 0x2000, scoped, tag = 'input window, operand 0, single buffered']
    #allocation3 [shape = 's32[1]{0}', space=sflag, size = 0x4, scoped, tag = 'scoped memory for tpu_custom_call.1']
    #allocation4 [shape = 's32[1]{0}', space=sflag, size = 0x4, scoped, tag = 'scoped memory for tpu_custom_call.1']
    #allocation5 [shape = 'u8[8192]{0}', space=vmem, size = 0x2000, scoped, tag = 'output window, operand 0, single buffered']
    %6 = vsyncpa [#allocation3], 0
    %7 = vsyncpa [#allocation4], 0
    // Predicated region
    $region2: #{tpu_custom_call.1} parent=1 // pred_check
      _
    $region3: #{tpu_custom_call.1} parent=1 // pred_check_branch
      %9 = sbr.rel (0) target = $region5
    $region4: #{tpu_custom_call.1} parent=1 // pred_region
      %s11 = ssub.s32 256, 256
      %12 = vsyncadd [#allocation3], %s11
      %s14 = sshll.u32 [#allocation2], 4
      %s15 = int_to_ptr.vmem [resolvable:$true] %s14
      %17 = dma.hbm_to_vmem [thread:$0]  %s0, 256, %s15, [#allocation3]
    $region5: #{tpu_custom_call.1} parent=1 // pred_fallthru
      _
    // Predicated region
    $region6: #{tpu_custom_call.1} parent=1 // pred_check
      _
    $region7: #{tpu_custom_call.1} parent=1 // pred_check_branch
      %19 = sbr.rel (0) target = $region9
    $region8: #{tpu_custom_call.1} parent=1 // pred_region
      %20 = dma.done [#allocation3], 256
    $region9: #{tpu_custom_call.1} parent=1 // pred_fallthru
      _
    %v21 = vld [vmem:[#allocation2] sm:$0xff]
    %v22 = vld [vmem:[#allocation2 + $0x8] sm:$0xff]
    %v23 = vadd.f32 %v21, 3.0
    %v24 = vadd.f32 %v22, 3.0
    %v25 = vmax.f32 %v23, 0.0
    %v26 = vmax.f32 %v24, 0.0
    %v27 = vmin.f32 %v25, 6.0
    %v28 = vmin.f32 %v26, 6.0
    %v29 = vrcp.pop 6.0
    %v30 = vmul.f32 %v27, %v29
    %v31 = vmul.f32 %v28, %v29
    %v32 = vmul.f32 %v21, %v30
    %v33 = vmul.f32 %v22, %v31
    %34 = vst [vmem:[#allocation5] sm:$0xff] %v32
    %35 = vst [vmem:[#allocation5 + $0x8] sm:$0xff] %v33
    // Predicated region
    $region10: #{tpu_custom_call.1} parent=1 // pred_check
      _
    $region11: #{tpu_custom_call.1} parent=1 // pred_check_branch
      %37 = sbr.rel (0) target = $region13
    $region12: #{tpu_custom_call.1} parent=1 // pred_region
      %s39 = ssub.s32 256, 256
      %40 = vsyncadd [#allocation4], %s39
      %s42 = sshll.u32 [#allocation5], 4
      %s43 = int_to_ptr.vmem [resolvable:$true] %s42
      %45 = dma.vmem_to_hbm [thread:$0]  %s43, 256, %s1, [#allocation4]
    $region13: #{tpu_custom_call.1} parent=1 // pred_fallthru
      _
    // Predicated region
    $region14: #{tpu_custom_call.1} parent=1 // pred_check
      _
    $region15: #{tpu_custom_call.1} parent=1 // pred_check_branch
      %47 = sbr.rel (0) target = $region17
    $region16: #{tpu_custom_call.1} parent=1 // pred_region
      %48 = dma.done [#allocation4], 256
    $region17: #{tpu_custom_call.1} parent=1 // pred_fallthru
      _
    %49 = vsyncpa [#allocation3], 1
    %50 = vsyncpa [#allocation4], 1

</llo_original>
